<compile_context>
chip_gen: v5e
topology: v5e:2x2
jax: 0.10.0
libtpu: 0.0.40
codegen_flags: <defaults>
</compile_context>

<pallas_src>
import functools

import jax
import jax.numpy as jnp
from jax import lax
from jax.experimental import pallas as pl
from jax.experimental.pallas import tpu as pltpu


def _round_up(x, m):
    return (x + m - 1) // m * m


def _vmem_capacity_bytes():
    try:
        return int(pltpu.get_tpu_info().vmem_capacity_bytes)
    except Exception:
        return 64 * 1024 * 1024  # conservative (v7x-sized) fallback


def _attention_kernel(q_ref, k_ref, v_ref, ctx_ref, w_ref, *, scale, lk_valid, lk_pad):
    # Block shapes:
    #   q_ref  : (TB, TQ, D)        k_ref: (TB, Lk_pad, D)   v_ref: (TB, Lk_pad, Dv)
    #   ctx_ref: (TB, TQ, Dv)       w_ref: (TB, TQ, Lk_pad)  (ragged cols masked on writeback)
    q = q_ref[...] * jnp.asarray(scale, q_ref.dtype)        # fold 1/sqrt(d) into Q
    k = k_ref[...]

    # scores[b, q, k] = sum_d q[b, q, d] * k[b, k, d]  -- no transpose of K.
    scores = lax.dot_general(
        q, k,
        dimension_numbers=(((2,), (2,)), ((0,), (0,))),
        preferred_element_type=jnp.float32,
    )                                                        # (TB, TQ, Lk_pad) f32

    # Mask padded key columns with a tiny broadcast bias (static trace-time branch).
    if lk_pad > lk_valid:
        col = lax.broadcasted_iota(jnp.int32, (1, 1, lk_pad), 2)
        bias = jnp.where(col < lk_valid, jnp.float32(0.0), jnp.float32(-1e30))
        scores = scores + bias

    # Numerically-stable softmax over the key axis, in f32.
    m = jnp.max(scores, axis=-1, keepdims=True)
    e = jnp.exp(scores - m)
    denom = jnp.sum(e, axis=-1, keepdims=True)
    inv = pl.reciprocal(denom, approx=True)                  # EUP slot (cheap)
    inv = inv * (2.0 - denom * inv)                          # one Newton step -> ~1e-7 rel
    w_ref[...] = (e * inv).astype(w_ref.dtype)               # write weights once, reuse below

    # context[b, q, d] = sum_k weights[b, q, k] * v[b, k, d]
    ctx = lax.dot_general(
        w_ref[...].astype(v_ref.dtype), v_ref[...],
        dimension_numbers=(((2,), (1,)), ((0,), (0,))),
        preferred_element_type=jnp.float32,
    )                                                        # (TB, TQ, Dv) f32
    ctx_ref[...] = ctx.astype(ctx_ref.dtype)


def _choose_tiles(B, Lq, Lk, D, Dv, itemsize, budget):
    """Pick (TB, TQ, Lk_pad) so the per-step working set fits `budget` bytes."""
    lk_pad = _round_up(Lk, 128)                    # lane-aligned key axis
    sublane = {4: 8, 2: 16, 1: 32}.get(itemsize, 8)
    d_pad = _round_up(D, 128)
    dv_pad = _round_up(Dv, 128)

    def footprint(tb, tq):
        # double-buffered in/out tiles (lane/sublane-padded) ...
        io = 2 * tb * (tq * d_pad + lk_pad * (d_pad + dv_pad) + tq * dv_pad) * itemsize
        io += 2 * tb * tq * lk_pad * 4             # f32 weights output tile
        # ... plus ~2 live full-size f32 intermediates (scores, exp)
        tmp = 2 * tb * tq * lk_pad * 4
        return io + tmp

    lq_ceil = _round_up(Lq, sublane)
    tq_cands = [t for t in (512, 256, 128) if t <= lq_ceil] or [lq_ceil]
    tb_cands = [t for t in range(min(B, 16), 0, -1) if B % t == 0] or [1]

    best = None
    for tq in tq_cands:
        for tb in tb_cands:
            if footprint(tb, tq) <= budget:
                key = (tb * tq, tb)                # biggest tile, prefer larger batch tile
                if best is None or key > best[0]:
                    best = (key, tb, tq)
    if best is None:
        tb, tq = 1, tq_cands[-1]                   # degenerate fallback for extreme shapes
    else:
        _, tb, tq = best
    return tb, tq, lk_pad


def scaled_attention(query, key, value, hidden_dim):
    """Pallas implementation of ScaledAttention.forward.

    query: (B, Lq, D), key: (B, Lk, D), value: (B, Lk, Dv)
    returns (context (B, Lq, Dv), attention_weights (B, Lq, Lk) float32)
    """
    B, Lq, D = query.shape
    _, Lk, _ = key.shape
    Dv = value.shape[-1]
    scale = 1.0 / (hidden_dim ** 0.5)
    itemsize = query.dtype.itemsize

    vmem_cap = _vmem_capacity_bytes()
    budget = int(0.45 * vmem_cap)                  # per-step working-set target
    vmem_limit = int(0.80 * vmem_cap)              # scoped-VMEM limit for Mosaic

    tb, tq, lk_pad = _choose_tiles(B, Lq, Lk, D, Dv, itemsize, budget)

    # Only remaining wrapper-side copy: pad the small K/V tensors along Lk when
    # it is not lane-aligned.  Query is never padded and outputs are never sliced.
    if lk_pad != Lk:
        key = jnp.pad(key, ((0, 0), (0, lk_pad - Lk), (0, 0)))
        value = jnp.pad(value, ((0, 0), (0, lk_pad - Lk), (0, 0)))

    kernel = functools.partial(
        _attention_kernel, scale=scale, lk_valid=Lk, lk_pad=lk_pad)

    out_shapes = (
        jax.ShapeDtypeStruct((B, Lq, Dv), query.dtype),    # context (true shape)
        jax.ShapeDtypeStruct((B, Lq, Lk), jnp.float32),    # attention weights (true shape)
    )

    grid = (pl.cdiv(B, tb), pl.cdiv(Lq, tq))

    cost = pl.CostEstimate(
        flops=2 * B * Lq * lk_pad * (D + Dv),
        transcendentals=B * Lq * lk_pad,
        bytes_accessed=(B * Lq * D + B * lk_pad * (D + Dv) + B * Lq * Dv) * itemsize
        + B * Lq * Lk * 4,
    )

    grid_spec = pltpu.PrefetchScalarGridSpec(
        num_scalar_prefetch=0,
        grid=grid,
        in_specs=[
            pl.BlockSpec((tb, tq, D), lambda bi, qi: (bi, qi, 0)),
            pl.BlockSpec((tb, lk_pad, D), lambda bi, qi: (bi, 0, 0)),
            pl.BlockSpec((tb, lk_pad, Dv), lambda bi, qi: (bi, 0, 0)),
        ],
        out_specs=[
            pl.BlockSpec((tb, tq, Dv), lambda bi, qi: (bi, qi, 0)),
            pl.BlockSpec((tb, tq, lk_pad), lambda bi, qi: (bi, qi, 0)),
        ],
    )

    ctx, weights = pl.pallas_call(
        kernel,
        out_shape=out_shapes,
        grid_spec=grid_spec,
        compiler_params=pltpu.CompilerParams(
            # Batch axis is megacore-parallel; qi stays "arbitrary" so the K/V
            # blocks remain resident across query tiles (no duplicated K/V DMA).
            dimension_semantics=("parallel", "arbitrary"),
            vmem_limit_bytes=vmem_limit,
        ),
        cost_estimate=cost,
    )(query, key, value)

    return ctx, weights


def _reference(query, key, value, hidden_dim):
    scale = 1.0 / (hidden_dim ** 0.5)
    scores = jnp.einsum("bqd,bkd->bqk", query, key) * scale
    w = jax.nn.softmax(scores, axis=-1)
    ctx = jnp.einsum("bqk,bkd->bqd", w, value)
    return ctx, w


if __name__ == "__main__":
    # Small shapes consistent with the module: batch=2, seq=8, hidden_dim=32.
    B, L, H = 2, 8, 32
    key_rng = jax.random.PRNGKey(0)
    kq, kk, kv = jax.random.split(key_rng, 3)
    query = jax.random.normal(kq, (B, L, H), dtype=jnp.float32)
    key_t = jax.random.normal(kk, (B, L, H), dtype=jnp.float32)
    value = jax.random.normal(kv, (B, L, H), dtype=jnp.float32)

    ctx, attn_w = scaled_attention(query, key_t, value, hidden_dim=H)
    jax.block_until_ready((ctx, attn_w))

    ref_ctx, ref_w = _reference(query, key_t, value, H)
    assert ctx.shape == (B, L, H) and attn_w.shape == (B, L, L)
    assert jnp.allclose(ctx, ref_ctx, atol=1e-5, rtol=1e-5)
    assert jnp.allclose(attn_w, ref_w, atol=1e-5, rtol=1e-5)

    print("KERNEL_OK")
</pallas_src>

<mosaic_0001>
module attributes {stable_mosaic.version = 11 : i64} {
  func.func @_attention_kernel(%arg0: i32, %arg1: i32, %arg2: memref<2x8x32xf32, #tpu.memory_space<vmem>>, %arg3: memref<2x128x32xf32, #tpu.memory_space<vmem>>, %arg4: memref<2x128x32xf32, #tpu.memory_space<vmem>>, %arg5: memref<2x8x32xf32, #tpu.memory_space<vmem>>, %arg6: memref<2x8x128xf32, #tpu.memory_space<vmem>>) attributes {dimension_semantics = [#tpu.dimension_semantics<parallel>, #tpu.dimension_semantics<arbitrary>], iteration_bounds = array<i64: 1, 1>, scalar_prefetch = 0 : i64, scratch_operands = 0 : i64, tpu.core_type = #tpu.core_type<tc>, window_params = [{transform_indices = @transform_0, window_bounds = array<i64: 2, 8, 32>}, {transform_indices = @transform_1, window_bounds = array<i64: 2, 128, 32>}, {transform_indices = @transform_2, window_bounds = array<i64: 2, 128, 32>}, {transform_indices = @transform_3, window_bounds = array<i64: 2, 8, 32>}, {transform_indices = @transform_4, window_bounds = array<i64: 2, 8, 128>}]} {
    %c0 = arith.constant 0 : index
    %c0_0 = arith.constant 0 : index
    %c0_1 = arith.constant 0 : index
    %0 = vector.load %arg2[%c0, %c0_0, %c0_1] : memref<2x8x32xf32, #tpu.memory_space<vmem>>, vector<2x8x32xf32>
    %cst = arith.constant 0.176776692 : f32
    %1 = vector.broadcast %cst : f32 to vector<2x8x32xf32>
    %2 = arith.mulf %0, %1 : vector<2x8x32xf32>
    %c0_2 = arith.constant 0 : index
    %c0_3 = arith.constant 0 : index
    %c0_4 = arith.constant 0 : index
    %3 = vector.load %arg3[%c0_2, %c0_3, %c0_4] : memref<2x128x32xf32, #tpu.memory_space<vmem>>, vector<2x128x32xf32>
    %cst_5 = arith.constant dense<0.000000e+00> : vector<2x8x128xf32>
    %4 = tpu.matmul %2, %3, %cst_5 {dimension_numbers = #tpu.dot_dimension_numbers<[2], [2], [1], [1], [0, 0, 0, 1, 1, 1], [0], [0]>} : vector<2x8x32xf32>, vector<2x128x32xf32>, vector<2x8x128xf32> -> vector<2x8x128xf32>
    %5 = tpu.iota {dimensions = array<i32: 2>} : vector<1x1x128xi32>
    %c8_i32 = arith.constant 8 : i32
    %6 = vector.broadcast %c8_i32 : i32 to vector<1x1x128xi32>
    %7 = arith.cmpi slt, %5, %6 : vector<1x1x128xi32>
    %cst_6 = arith.constant 0.000000e+00 : f32
    %cst_7 = arith.constant -1.000000e+30 : f32
    %8 = vector.broadcast %cst_6 : f32 to vector<1x1x128xf32>
    %9 = vector.broadcast %cst_7 : f32 to vector<1x1x128xf32>
    %10 = arith.select %7, %8, %9 : vector<1x1x128xi1>, vector<1x1x128xf32>
    %11 = vector.broadcast %10 : vector<1x1x128xf32> to vector<2x8x128xf32>
    %12 = arith.addf %4, %11 : vector<2x8x128xf32>
    %cst_8 = arith.constant dense<0xFF800000> : vector<2x8xf32>
    %13 = vector.multi_reduction <maximumf>, %12, %cst_8 [2] : vector<2x8x128xf32> to vector<2x8xf32>
    %14 = vector.shape_cast %13 : vector<2x8xf32> to vector<2x8x1xf32>
    %15 = vector.broadcast %14 : vector<2x8x1xf32> to vector<2x8x128xf32>
    %16 = arith.subf %12, %15 : vector<2x8x128xf32>
    %17 = math.exp %16 : vector<2x8x128xf32>
    %cst_9 = arith.constant dense<0.000000e+00> : vector<2x8xf32>
    %18 = vector.multi_reduction <add>, %17, %cst_9 [2] : vector<2x8x128xf32> to vector<2x8xf32>
    %19 = vector.shape_cast %18 : vector<2x8xf32> to vector<2x8x1xf32>
    %20 = tpu.reciprocal %19 {approx = true} : vector<2x8x1xf32> -> vector<2x8x1xf32>
    %21 = arith.mulf %19, %20 : vector<2x8x1xf32>
    %cst_10 = arith.constant 2.000000e+00 : f32
    %22 = vector.broadcast %cst_10 : f32 to vector<2x8x1xf32>
    %23 = arith.subf %22, %21 : vector<2x8x1xf32>
    %24 = arith.mulf %20, %23 : vector<2x8x1xf32>
    %25 = vector.broadcast %24 : vector<2x8x1xf32> to vector<2x8x128xf32>
    %26 = arith.mulf %17, %25 : vector<2x8x128xf32>
    %c0_11 = arith.constant 0 : index
    %c0_12 = arith.constant 0 : index
    %c0_13 = arith.constant 0 : index
    %27 = vector.load %arg6[%c0_11, %c0_12, %c0_13] : memref<2x8x128xf32, #tpu.memory_space<vmem>>, vector<2x8x128xf32>
    tpu.vector_store %arg6[%c0_11, %c0_12, %c0_13], %26 {strides = array<i32>} : memref<2x8x128xf32, #tpu.memory_space<vmem>>, vector<2x8x128xf32>,
    %c0_14 = arith.constant 0 : index
    %c0_15 = arith.constant 0 : index
    %c0_16 = arith.constant 0 : index
    %28 = vector.load %arg6[%c0_14, %c0_15, %c0_16] : memref<2x8x128xf32, #tpu.memory_space<vmem>>, vector<2x8x128xf32>
    %c0_17 = arith.constant 0 : index
    %c0_18 = arith.constant 0 : index
    %c0_19 = arith.constant 0 : index
    %29 = vector.load %arg4[%c0_17, %c0_18, %c0_19] : memref<2x128x32xf32, #tpu.memory_space<vmem>>, vector<2x128x32xf32>
    %cst_20 = arith.constant dense<0.000000e+00> : vector<2x8x32xf32>
    %30 = tpu.matmul %28, %29, %cst_20 {dimension_numbers = #tpu.dot_dimension_numbers<[2], [1], [1], [2], [0, 0, 0, 1, 1, 2], [0], [0]>} : vector<2x8x128xf32>, vector<2x128x32xf32>, vector<2x8x32xf32> -> vector<2x8x32xf32>
    %c0_21 = arith.constant 0 : index
    %c0_22 = arith.constant 0 : index
    %c0_23 = arith.constant 0 : index
    %31 = vector.load %arg5[%c0_21, %c0_22, %c0_23] : memref<2x8x32xf32, #tpu.memory_space<vmem>>, vector<2x8x32xf32>
    tpu.vector_store %arg5[%c0_21, %c0_22, %c0_23], %30 {strides = array<i32>} : memref<2x8x32xf32, #tpu.memory_space<vmem>>, vector<2x8x32xf32>,
    return
  }
  func.func @transform_0(%arg0: i32, %arg1: i32) -> (i32, i32, i32) {
    %c0_i32 = arith.constant 0 : i32
    %c0_i32_0 = arith.constant 0 : i32
    return %arg0, %arg1, %c0_i32 : i32, i32, i32
  }
  func.func @transform_1(%arg0: i32, %arg1: i32) -> (i32, i32, i32) {
    %c0_i32 = arith.constant 0 : i32
    %c0_i32_0 = arith.constant 0 : i32
    %c0_i32_1 = arith.constant 0 : i32
    return %arg0, %c0_i32, %c0_i32_0 : i32, i32, i32
  }
  func.func @transform_2(%arg0: i32, %arg1: i32) -> (i32, i32, i32) {
    %c0_i32 = arith.constant 0 : i32
    %c0_i32_0 = arith.constant 0 : i32
    %c0_i32_1 = arith.constant 0 : i32
    return %arg0, %c0_i32, %c0_i32_0 : i32, i32, i32
  }
  func.func @transform_3(%arg0: i32, %arg1: i32) -> (i32, i32, i32) {
    %c0_i32 = arith.constant 0 : i32
    %c0_i32_0 = arith.constant 0 : i32
    return %arg0, %arg1, %c0_i32 : i32, i32, i32
  }
  func.func @transform_4(%arg0: i32, %arg1: i32) -> (i32, i32, i32) {
    %c0_i32 = arith.constant 0 : i32
    %c0_i32_0 = arith.constant 0 : i32
    return %arg0, %arg1, %c0_i32 : i32, i32, i32
  }
}

</mosaic_0001>

<llo_original>
// kernel: tpu_custom_call.1
$region0: #{tpu_custom_call.1}
  #allocation0 [shape = 'u32[]', space=smem, size = 0x4, offset = 0x4, fixed_abs, tag = 'smem constant byte address 0x4 - core index']
  #allocation1 [shape = 'u32[72,128]{1,0:T(1,128)}', space=vmem, size = 0x9000, scoped, tag = 'internal scratch']
  %s0 = inlined_call_operand.vmem [shape: f32[2,8,32], index: 0, kind: input, shape index: {}]
  %s1 = inlined_call_operand.vmem [shape: f32[2,128,32], index: 1, kind: input, shape index: {}]
  %s2 = inlined_call_operand.vmem [shape: f32[2,128,32], index: 2, kind: input, shape index: {}]
  %s3 = inlined_call_operand.hbm [shape: f32[2,8,32], index: 3, kind: output, shape index: {0}]
  %s4 = inlined_call_operand.hbm [shape: f32[2,8,8], index: 4, kind: output, shape index: {1}]
  %5 = xla_tuple %s3, %s4
  %s6 = sld [smem:[#allocation0]]
  $region30: #{tpu_custom_call.1} parent=0
    _
  %s8 = ssub.s32 1, %s6
  %s9 = scalar_select 0, %s8, %s6
  $region1: #{tpu_custom_call.1} parent=0
    #allocation2 [shape = 'u8[8192]{0}', space=vmem, size = 0x2000, scoped, tag = 'output window, operand 0, single buffered']
    #allocation3 [shape = 's32[1]{0}', space=sflag, size = 0x4, scoped, tag = 'scoped memory for tpu_custom_call.1']
    #allocation4 [shape = 'u8[8192]{0}', space=vmem, size = 0x2000, scoped, tag = 'output window, operand 1, single buffered']
    #allocation5 [shape = 's32[1]{0}', space=sflag, size = 0x4, scoped, tag = 'scoped memory for tpu_custom_call.1']
    %10 = vsyncpa [#allocation3], 0
    %11 = vsyncpa [#allocation5], 0
    // Predicated region
    $region2: #{tpu_custom_call.1} parent=1 // pred_check
      _
    $region3: #{tpu_custom_call.1} parent=1 // pred_check_branch
      %13 = sbr.rel (0) target = $region5
    $region4: #{tpu_custom_call.1} parent=1 // pred_region
      _
    $region5: #{tpu_custom_call.1} parent=1 // pred_fallthru
      _
    // Predicated region
    $region6: #{tpu_custom_call.1} parent=1 // pred_check
      _
    $region7: #{tpu_custom_call.1} parent=1 // pred_check_branch
      %15 = sbr.rel (0) target = $region9
    $region8: #{tpu_custom_call.1} parent=1 // pred_region
      _
    $region9: #{tpu_custom_call.1} parent=1 // pred_fallthru
      _
    // Predicated region
    $region10: #{tpu_custom_call.1} parent=1 // pred_check
      _
    $region11: #{tpu_custom_call.1} parent=1 // pred_check_branch
      %17 = sbr.rel (0) target = $region13
    $region12: #{tpu_custom_call.1} parent=1 // pred_region
      _
    $region13: #{tpu_custom_call.1} parent=1 // pred_fallthru
      _
    %v18 = vld [vmem:[%s0] sm:$0xff]
    %v19 = vld [vmem:[%s0 + $0x8] sm:$0xff]
    %v20 = vmul.f32 %v18, 0.17677669
    %v21 = vmul.f32 %v19, 0.17677669
    %v22 = vld [vmem:[%s1] sm:$0xff]
    %v23 = vld [vmem:[%s1 + $0x8] sm:$0xff]
    %v24 = vld [vmem:[%s1 + $0x10] sm:$0xff]
    %v25 = vld [vmem:[%s1 + $0x18] sm:$0xff]
    %v26 = vld [vmem:[%s1 + $0x20] sm:$0xff]
    %v27 = vld [vmem:[%s1 + $0x28] sm:$0xff]
    %v28 = vld [vmem:[%s1 + $0x30] sm:$0xff]
    %v29 = vld [vmem:[%s1 + $0x38] sm:$0xff]
    %v30 = vld [vmem:[%s1 + $0x40] sm:$0xff]
    %v31 = vld [vmem:[%s1 + $0x48] sm:$0xff]
    %v32 = vld [vmem:[%s1 + $0x50] sm:$0xff]
    %v33 = vld [vmem:[%s1 + $0x58] sm:$0xff]
    %v34 = vld [vmem:[%s1 + $0x60] sm:$0xff]
    %v35 = vld [vmem:[%s1 + $0x68] sm:$0xff]
    %v36 = vld [vmem:[%s1 + $0x70] sm:$0xff]
    %v37 = vld [vmem:[%s1 + $0x78] sm:$0xff]
    %v38 = vld [vmem:[%s1 + $0x80] sm:$0xff]
    %v39 = vld [vmem:[%s1 + $0x88] sm:$0xff]
    %v40 = vld [vmem:[%s1 + $0x90] sm:$0xff]
    %v41 = vld [vmem:[%s1 + $0x98] sm:$0xff]
    %v42 = vld [vmem:[%s1 + $0xa0] sm:$0xff]
    %v43 = vld [vmem:[%s1 + $0xa8] sm:$0xff]
    %v44 = vld [vmem:[%s1 + $0xb0] sm:$0xff]
    %v45 = vld [vmem:[%s1 + $0xb8] sm:$0xff]
    %v46 = vld [vmem:[%s1 + $0xc0] sm:$0xff]
    %v47 = vld [vmem:[%s1 + $0xc8] sm:$0xff]
    %v48 = vld [vmem:[%s1 + $0xd0] sm:$0xff]
    %v49 = vld [vmem:[%s1 + $0xd8] sm:$0xff]
    %v50 = vld [vmem:[%s1 + $0xe0] sm:$0xff]
    %v51 = vld [vmem:[%s1 + $0xe8] sm:$0xff]
    %v52 = vld [vmem:[%s1 + $0xf0] sm:$0xff]
    %v53 = vld [vmem:[%s1 + $0xf8] sm:$0xff]
    %v54 = vlaneseq
    %v55 = vand.u32 %v54, 127
    %vm56 = vcmp.lt.s32.totalorder %v55, 8
    %v57 = vsel %vm56, 0.0, -1e+30
    %vm58 = vcmask 261120
    %v60 = vsel %vm58, %v20, 0
    %v63 = vsel %vm58, %v22, 0
    %v66 = vsel %vm58, %v23, 0
    %v69 = vsel %vm58, %v24, 0
    %v72 = vsel %vm58, %v25, 0
    %v75 = vsel %vm58, %v26, 0
    %v78 = vsel %vm58, %v27, 0
    %v81 = vsel %vm58, %v28, 0
    %v84 = vsel %vm58, %v29, 0
    %v87 = vsel %vm58, %v30, 0
    %v90 = vsel %vm58, %v31, 0
    %v93 = vsel %vm58, %v32, 0
    %v96 = vsel %vm58, %v33, 0
    %v99 = vsel %vm58, %v34, 0
    %v102 = vsel %vm58, %v35, 0
    %v105 = vsel %vm58, %v36, 0
    %v108 = vsel %vm58, %v37, 0
    %110 = vmatpush.xpose.msra.mxu0 %v108
    %111 = vmatpush.xpose.msra.mxu0 %v105
    %112 = vmatpush.xpose.msra.mxu0 %v102
    %113 = vmatpush.xpose.msra.mxu0 %v99
    %114 = vmatpush.xpose.msra.mxu0 %v96
    %115 = vmatpush.xpose.msra.mxu0 %v93
    %116 = vmatpush.xpose.msra.mxu0 %v90
    %117 = vmatpush.xpose.msra.mxu0 %v87
    %118 = vmatpush.xpose.msra.mxu0 %v84
    %119 = vmatpush.xpose.msra.mxu0 %v81
    %120 = vmatpush.xpose.msra.mxu0 %v78
    %121 = vmatpush.xpose.msra.mxu0 %v75
    %122 = vmatpush.xpose.msra.mxu0 %v72
    %123 = vmatpush.xpose.msra.mxu0 %v69
    %124 = vmatpush.xpose.msra.mxu0 %v66
    %125 = vmatpush.xpose.msra.mxu0 %v63
    %126 = vmatmul.f32.gmra.mxu0 %v60
    %v127 = vpop.f32.mrf.mxu0
    %v128 = vadd.f32 %v57, %v127
    %129 = vdwg.mxu0
    %v131 = vsel %vm58, %v21, 0
    %v134 = vsel %vm58, %v38, 0
    %v137 = vsel %vm58, %v39, 0
    %v140 = vsel %vm58, %v40, 0
    %v143 = vsel %vm58, %v41, 0
    %v146 = vsel %vm58, %v42, 0
    %v149 = vsel %vm58, %v43, 0
    %v152 = vsel %vm58, %v44, 0
    %v155 = vsel %vm58, %v45, 0
    %v158 = vsel %vm58, %v46, 0
    %v161 = vsel %vm58, %v47, 0
    %v164 = vsel %vm58, %v48, 0
    %v167 = vsel %vm58, %v49, 0
    %v170 = vsel %vm58, %v50, 0
    %v173 = vsel %vm58, %v51, 0
    %v176 = vsel %vm58, %v52, 0
    %v179 = vsel %vm58, %v53, 0
    %181 = vmatpush.xpose.msra.mxu0 %v179
    %182 = vmatpush.xpose.msra.mxu0 %v176
    %183 = vmatpush.xpose.msra.mxu0 %v173
    %184 = vmatpush.xpose.msra.mxu0 %v170
    %185 = vmatpush.xpose.msra.mxu0 %v167
    %186 = vmatpush.xpose.msra.mxu0 %v164
    %187 = vmatpush.xpose.msra.mxu0 %v161
    %188 = vmatpush.xpose.msra.mxu0 %v158
    %189 = vmatpush.xpose.msra.mxu0 %v155
    %190 = vmatpush.xpose.msra.mxu0 %v152
    %191 = vmatpush.xpose.msra.mxu0 %v149
    %192 = vmatpush.xpose.msra.mxu0 %v146
    %193 = vmatpush.xpose.msra.mxu0 %v143
    %194 = vmatpush.xpose.msra.mxu0 %v140
    %195 = vmatpush.xpose.msra.mxu0 %v137
    %196 = vmatpush.xpose.msra.mxu0 %v134
    %197 = vmatmul.f32.gmra.mxu0 %v131
    %v198 = vpop.f32.mrf.mxu0
    %v199 = vadd.f32 %v57, %v198
    %200 = vdwg.mxu0
    %201 = vmax.xlane.f32.xlu0 %v128
    %v202 = vpop.xlane.xlu0 %201
    %203 = vmax.xlane.f32.xlu0 %v199
    %v204 = vpop.xlane.xlu0 %203
    %v205 = vsub.f32 %v128, %v202
    %v206 = vsub.f32 %v199, %v204
    %v207 = vmul.f32 %v205, 1.442695
    %v208 = vpow.pop %v207
    %v209 = vmul.f32 %v206, 1.442695
    %v210 = vpow.pop %v209
    %211 = vadd.xlane.f32.xlu0 %v208
    %v212 = vpop.xlane.xlu0 %211
    %213 = vadd.xlane.f32.xlu0 %v210
    %v214 = vpop.xlane.xlu0 %213
    %v215 = vrcp.pop %v212
    %v216 = vrcp.pop %v214
    %v217 = vmul.f32 %v212, %v215
    %v218 = vmul.f32 %v214, %v216
    %v219 = vsub.f32 2.0, %v217
    %v220 = vsub.f32 2.0, %v218
    %v221 = vmul.f32 %v215, %v219
    %v222 = vmul.f32 %v216, %v220
    %v223 = vmul.f32 %v208, %v221
    %v224 = vmul.f32 %v210, %v222
    %225 = vst [vmem:[#allocation4] sm:$0xff] %v223
    %226 = vst [vmem:[#allocation4 + $0x8] sm:$0xff] %v224
    %v227 = vld [vmem:[#allocation4] sm:$0xff]
    %v228 = vld [vmem:[#allocation4 + $0x8] sm:$0xff]
    %v229 = vld [vmem:[%s2] sm:$0xff]
    %v230 = vld [vmem:[%s2 + $0x8] sm:$0xff]
    %v231 = vld [vmem:[%s2 + $0x10] sm:$0xff]
    %v232 = vld [vmem:[%s2 + $0x18] sm:$0xff]
    %v233 = vld [vmem:[%s2 + $0x20] sm:$0xff]
    %v234 = vld [vmem:[%s2 + $0x28] sm:$0xff]
    %v235 = vld [vmem:[%s2 + $0x30] sm:$0xff]
    %v236 = vld [vmem:[%s2 + $0x38] sm:$0xff]
    %v237 = vld [vmem:[%s2 + $0x40] sm:$0xff]
    %v238 = vld [vmem:[%s2 + $0x48] sm:$0xff]
    %v239 = vld [vmem:[%s2 + $0x50] sm:$0xff]
    %v240 = vld [vmem:[%s2 + $0x58] sm:$0xff]
    %v241 = vld [vmem:[%s2 + $0x60] sm:$0xff]
    %v242 = vld [vmem:[%s2 + $0x68] sm:$0xff]
    %v243 = vld [vmem:[%s2 + $0x70] sm:$0xff]
    %v244 = vld [vmem:[%s2 + $0x78] sm:$0xff]
    %v245 = vld [vmem:[%s2 + $0x80] sm:$0xff]
    %v246 = vld [vmem:[%s2 + $0x88] sm:$0xff]
    %v247 = vld [vmem:[%s2 + $0x90] sm:$0xff]
    %v248 = vld [vmem:[%s2 + $0x98] sm:$0xff]
    %v249 = vld [vmem:[%s2 + $0xa0] sm:$0xff]
    %v250 = vld [vmem:[%s2 + $0xa8] sm:$0xff]
    %v251 = vld [vmem:[%s2 + $0xb0] sm:$0xff]
    %v252 = vld [vmem:[%s2 + $0xb8] sm:$0xff]
    %v253 = vld [vmem:[%s2 + $0xc0] sm:$0xff]
    %v254 = vld [vmem:[%s2 + $0xc8] sm:$0xff]
    %v255 = vld [vmem:[%s2 + $0xd0] sm:$0xff]
    %v256 = vld [vmem:[%s2 + $0xd8] sm:$0xff]
    %v257 = vld [vmem:[%s2 + $0xe0] sm:$0xff]
    %v258 = vld [vmem:[%s2 + $0xe8] sm:$0xff]
    %v259 = vld [vmem:[%s2 + $0xf0] sm:$0xff]
    %v260 = vld [vmem:[%s2 + $0xf8] sm:$0xff]
    %261 = vmatpush.msra.mxu0 %v244
    %262 = vmatpush.msra.mxu0 %v243
    %263 = vmatpush.msra.mxu0 %v242
    %264 = vmatpush.msra.mxu0 %v241
    %265 = vmatpush.msra.mxu0 %v240
    %266 = vmatpush.msra.mxu0 %v239
    %267 = vmatpush.msra.mxu0 %v238
    %268 = vmatpush.msra.mxu0 %v237
    %269 = vmatpush.msra.mxu0 %v236
    %270 = vmatpush.msra.mxu0 %v235
    %271 = vmatpush.msra.mxu0 %v234
    %272 = vmatpush.msra.mxu0 %v233
    %273 = vmatpush.msra.mxu0 %v232
    %274 = vmatpush.msra.mxu0 %v231
    %275 = vmatpush.msra.mxu0 %v230
    %276 = vmatpush.msra.mxu0 %v229
    %277 = vmatmul.f32.gmra.mxu0 %v227
    %v278 = vpop.f32.mrf.mxu0
    %v279 = vadd.f32 0.0, %v278
    %280 = vdwg.mxu0
    %281 = vmatpush.msra.mxu0 %v260
    %282 = vmatpush.msra.mxu0 %v259
    %283 = vmatpush.msra.mxu0 %v258
    %284 = vmatpush.msra.mxu0 %v257
    %285 = vmatpush.msra.mxu0 %v256
    %286 = vmatpush.msra.mxu0 %v255
    %287 = vmatpush.msra.mxu0 %v254
    %288 = vmatpush.msra.mxu0 %v253
    %289 = vmatpush.msra.mxu0 %v252
    %290 = vmatpush.msra.mxu0 %v251
    %291 = vmatpush.msra.mxu0 %v250
    %292 = vmatpush.msra.mxu0 %v249
    %293 = vmatpush.msra.mxu0 %v248
    %294 = vmatpush.msra.mxu0 %v247
    %295 = vmatpush.msra.mxu0 %v246
    %296 = vmatpush.msra.mxu0 %v245
    %297 = vmatmul.f32.gmra.mxu0 %v228
    %v298 = vpop.f32.mrf.mxu0
    %v299 = vadd.f32 0.0, %v298
    %300 = vdwg.mxu0
    %301 = vst.msk [vmem:[#allocation2] sm:$0xff] %vm58, %v279
    %302 = vst.msk [vmem:[#allocation2 + $0x8] sm:$0xff] %vm58, %v299
    // Predicated region
    $region14: #{tpu_custom_call.1} parent=1 // pred_check
      _
    $region15: #{tpu_custom_call.1} parent=1 // pred_check_branch
      %304 = sbr.rel (0) target = $region17
    $region16: #{tpu_custom_call.1} parent=1 // pred_region
      %306 = vsyncadd [#allocation3], 0
      %s307 = sshll.u32 [#allocation2], 4
      %s308 = int_to_ptr.vmem [resolvable:$true] %s307
      %s309 = sshll.u32 %s3, 4
      %s310 = int_to_ptr.hbm [resolvable:$true] %s309
      %315 = dma.vmem_to_hbm [thread:$0]  %s308, 256, %s310, [#allocation3], 128, 128, 8
    $region17: #{tpu_custom_call.1} parent=1 // pred_fallthru
      _
    // Predicated region
    $region18: #{tpu_custom_call.1} parent=1 // pred_check
      _
    $region19: #{tpu_custom_call.1} parent=1 // pred_check_branch
      %317 = sbr.rel (0) target = $region21
    $region20: #{tpu_custom_call.1} parent=1 // pred_region
      %319 = vsyncadd [#allocation5], 0
      %s320 = sshll.u32 [#allocation4], 4
      %s321 = int_to_ptr.vmem [resolvable:$true] %s320
      %s322 = sshll.u32 %s4, 4
      %s323 = int_to_ptr.hbm [resolvable:$true] %s322
      %328 = dma.vmem_to_hbm [thread:$0]  %s321, 256, %s323, [#allocation5], 128, 128, 8
    $region21: #{tpu_custom_call.1} parent=1 // pred_fallthru
      _
    // Predicated region
    $region22: #{tpu_custom_call.1} parent=1 // pred_check
      _
    $region23: #{tpu_custom_call.1} parent=1 // pred_check_branch
      %330 = sbr.rel (0) target = $region25
    $region24: #{tpu_custom_call.1} parent=1 // pred_region
      %332 = dma.done [#allocation3], 256
    $region25: #{tpu_custom_call.1} parent=1 // pred_fallthru
      _
    // Predicated region
    $region26: #{tpu_custom_call.1} parent=1 // pred_check
      _
    $region27: #{tpu_custom_call.1} parent=1 // pred_check_branch
      %334 = sbr.rel (0) target = $region29
    $region28: #{tpu_custom_call.1} parent=1 // pred_region
      %336 = dma.done [#allocation5], 256
    $region29: #{tpu_custom_call.1} parent=1 // pred_fallthru
      _
    %337 = vsyncpa [#allocation3], 1
    %338 = vsyncpa [#allocation5], 1

</llo_original>
